<compile_context>
chip_gen: v7x
topology: tpu7x:2x2x1
jax: 0.10.0
libtpu: 0.0.40
codegen_flags: <defaults>
</compile_context>

<pallas_src>
import functools

import jax
import jax.numpy as jnp
from jax.experimental import pallas as pl
from jax.experimental.pallas import tpu as pltpu

LANE = 128        # TPU lane width (last dim)
SUBLANE = 8       # f32 sublane width (second-to-last dim)
BF16_BAND = 16    # bf16 packed-sublane alignment used for parameter bands


def _round_up(n, m):
    return (n + m - 1) // m * m


def _packed_layout(d_in):
    """Row offsets of each padded operand inside the packed bf16 (rows, 128) buffer."""
    d_in_pad = _round_up(d_in, SUBLANE)
    offs, r = {}, 0
    offs["w1"] = r; r += _round_up(d_in_pad, BF16_BAND)   # (d_in_pad, 128), zero-padded
    offs["w2"] = r; r += LANE                              # (128, 128), zero-padded
    offs["w3"] = r; r += LANE                              # (128, 128), zero-padded
    offs["b1"] = r; r += BF16_BAND                         # bias lives in row 0 of band
    offs["b2"] = r; r += BF16_BAND
    offs["b3"] = r; r += BF16_BAND
    return offs, r, d_in_pad


def pack_params(w1, b1, w2, b2, w3, b3):
    """Zero-pad every operand to lane-dense tiles and pack into ONE bf16 buffer."""
    d_in, h1 = w1.shape
    h2 = w2.shape[1]
    d_out = w3.shape[1]
    assert max(h1, h2, d_out) <= LANE, "hidden/output dims must fit one lane tile"
    offs, rows, _ = _packed_layout(d_in)
    p = jnp.zeros((rows, LANE), jnp.bfloat16)
    p = p.at[offs["w1"]:offs["w1"] + d_in, :h1].set(w1.astype(jnp.bfloat16))
    p = p.at[offs["w2"]:offs["w2"] + h1, :h2].set(w2.astype(jnp.bfloat16))
    p = p.at[offs["w3"]:offs["w3"] + h2, :d_out].set(w3.astype(jnp.bfloat16))
    p = p.at[offs["b1"], :h1].set(b1.reshape(-1).astype(jnp.bfloat16))
    p = p.at[offs["b2"], :h2].set(b2.reshape(-1).astype(jnp.bfloat16))
    p = p.at[offs["b3"], :d_out].set(b3.reshape(-1).astype(jnp.bfloat16))
    return p


def _make_mlp_kernel(d_in_pad, d_out_pad, offs):
    w1_o, w2_o, w3_o = offs["w1"], offs["w2"], offs["w3"]
    b1_o, b2_o, b3_o = offs["b1"], offs["b2"], offs["b3"]

    def kernel(x_ref, p_ref, o_ref):
        # bf16 inputs to the MXU, f32 accumulation throughout.
        x = x_ref[...].astype(jnp.bfloat16)                 # (tb, d_in_pad)
        # Static, band-aligned views into the single packed bf16 parameter buffer.
        w1 = p_ref[w1_o:w1_o + d_in_pad, :]                 # (d_in_pad, 128)
        w2 = p_ref[w2_o:w2_o + LANE, :]                     # (128, 128)
        w3 = p_ref[w3_o:w3_o + LANE, :]                     # (128, 128)
        b1 = p_ref[b1_o:b1_o + 1, :].astype(jnp.float32)    # (1, 128)
        b2 = p_ref[b2_o:b2_o + 1, :].astype(jnp.float32)
        b3 = p_ref[b3_o:b3_o + 1, :].astype(jnp.float32)

        h1 = jnp.dot(x, w1, preferred_element_type=jnp.float32) + b1
        h1 = jnp.maximum(h1, 0.0).astype(jnp.bfloat16)
        h2 = jnp.dot(h1, w2, preferred_element_type=jnp.float32) + b2
        h2 = jnp.maximum(h2, 0.0).astype(jnp.bfloat16)
        y = jnp.dot(h2, w3, preferred_element_type=jnp.float32) + b3
        # Narrow store: only the (padded-to-8) live output columns go back to HBM.
        o_ref[...] = y[:, :d_out_pad].astype(o_ref.dtype)

    return kernel


@functools.partial(jax.jit, static_argnames=("out_features", "batch_tile"))
def ann_model_forward(x, packed_params, *, out_features=2, batch_tile=4096):
    batch, d_in = x.shape
    offs, rows, d_in_pad = _packed_layout(d_in)
    assert packed_params.shape == (rows, LANE), packed_params.shape
    d_out_pad = min(_round_up(out_features, SUBLANE), LANE)

    # Batch tiling without materializing a padded copy of x: ragged tails are
    # masked by Pallas.  Mid-size batches are split so the ("parallel",) grid
    # keeps >= 2 steps (usable by the 2nd TensorCore on v7x).
    if batch > batch_tile:
        tb = batch_tile
    elif batch >= 2048:
        tb = _round_up(pl.cdiv(batch, 2), SUBLANE)
    else:
        tb = _round_up(batch, SUBLANE)
    num_tiles = pl.cdiv(batch, tb)

    xp = x.astype(jnp.float32)
    if d_in_pad != d_in:                      # feature-dim pad only (tiny; no-op here)
        xp = jnp.pad(xp, ((0, 0), (0, d_in_pad - d_in)))

    out = pl.pallas_call(
        _make_mlp_kernel(d_in_pad, d_out_pad, offs),
        out_shape=jax.ShapeDtypeStruct((batch, d_out_pad), jnp.float32),
        grid=(num_tiles,),
        in_specs=[
            pl.BlockSpec((tb, d_in_pad), lambda i: (i, 0)),
            # Single packed-parameter block; same index every step -> stays in VMEM.
            pl.BlockSpec((rows, LANE), lambda i: (0, 0)),
        ],
        out_specs=pl.BlockSpec((tb, d_out_pad), lambda i: (i, 0)),
        compiler_params=pltpu.CompilerParams(
            dimension_semantics=("parallel",),
            vmem_limit_bytes=48 * 1024 * 1024),
    )(xp, packed_params)

    return out if d_out_pad == out_features else out[:, :out_features]


def init_params(key, input_features=8, hidden1=20, hidden2=20, out_features=2):
    """Deterministic init matching PyTorch nn.Linear default (uniform +-1/sqrt(fan_in))."""
    def linear(key, fan_in, fan_out):
        kw, kb = jax.random.split(key)
        bound = 1.0 / jnp.sqrt(jnp.float32(fan_in))
        # Stored (in, out) so the kernel computes x @ W (equivalent to x @ W_pt.T).
        w = jax.random.uniform(kw, (fan_in, fan_out), jnp.float32, -bound, bound)
        b = jax.random.uniform(kb, (1, fan_out), jnp.float32, -bound, bound)
        return w, b

    k1, k2, k3 = jax.random.split(key, 3)
    w1, b1 = linear(k1, input_features, hidden1)
    w2, b2 = linear(k2, hidden1, hidden2)
    w3, b3 = linear(k3, hidden2, out_features)
    return (w1, b1, w2, b2, w3, b3)


def _reference_forward(x, params):
    w1, b1, w2, b2, w3, b3 = params
    h1 = jnp.maximum(x @ w1 + b1, 0.0)
    h2 = jnp.maximum(h1 @ w2 + b2, 0.0)
    return h2 @ w3 + b3


if __name__ == "__main__":
    key = jax.random.PRNGKey(0)
    kx, kp = jax.random.split(key)

    batch, input_features = 8, 8
    x = jax.random.normal(kx, (batch, input_features), jnp.float32)
    raw_params = init_params(kp, input_features=input_features,
                             hidden1=20, hidden2=20, out_features=2)
    packed = pack_params(*raw_params)   # pack/pad once (bf16); reused across every call

    out = ann_model_forward(x, packed, out_features=2)
    out = jax.block_until_ready(out)

    ref = _reference_forward(x, raw_params)       # f32 reference
    assert out.shape == (batch, 2), out.shape
    # bf16 weights/activations with f32 accumulation -> loosened tolerance.
    assert jnp.allclose(out, ref, atol=3e-2, rtol=3e-2), "mismatch vs reference"

    print("KERNEL_OK")
</pallas_src>

<mosaic_0001>
module attributes {stable_mosaic.version = 11 : i64} {
  func.func @kernel(%arg0: i32, %arg1: memref<8x8xf32, #tpu.memory_space<vmem>>, %arg2: memref<320x128xbf16, #tpu.memory_space<vmem>>, %arg3: memref<8x8xf32, #tpu.memory_space<vmem>>) attributes {dimension_semantics = [#tpu.dimension_semantics<parallel>], iteration_bounds = array<i64: 1>, scalar_prefetch = 0 : i64, scratch_operands = 0 : i64, tpu.core_type = #tpu.core_type<tc>, window_params = [{transform_indices = @transform_0, window_bounds = array<i64: 8, 8>}, {pipeline_mode = #tpu.pipeline_mode<synchronous>, transform_indices = @transform_1, window_bounds = array<i64: 320, 128>}, {transform_indices = @transform_2, window_bounds = array<i64: 8, 8>}]} {
    %c0 = arith.constant 0 : index
    %c0_0 = arith.constant 0 : index
    %0 = vector.load %arg1[%c0, %c0_0] : memref<8x8xf32, #tpu.memory_space<vmem>>, vector<8x8xf32>
    %1 = arith.truncf %0 : vector<8x8xf32> to vector<8x8xbf16>
    %c0_1 = arith.constant 0 : index
    %c0_2 = arith.constant 0 : index
    %2 = vector.load %arg2[%c0_1, %c0_2] : memref<320x128xbf16, #tpu.memory_space<vmem>>, vector<8x128xbf16>
    %c16 = arith.constant 16 : index
    %c0_3 = arith.constant 0 : index
    %3 = vector.load %arg2[%c16, %c0_3] : memref<320x128xbf16, #tpu.memory_space<vmem>>, vector<128x128xbf16>
    %c144 = arith.constant 144 : index
    %c0_4 = arith.constant 0 : index
    %4 = vector.load %arg2[%c144, %c0_4] : memref<320x128xbf16, #tpu.memory_space<vmem>>, vector<128x128xbf16>
    %c272 = arith.constant 272 : index
    %c0_5 = arith.constant 0 : index
    %5 = vector.load %arg2[%c272, %c0_5] : memref<320x128xbf16, #tpu.memory_space<vmem>>, vector<1x128xbf16>
    %6 = arith.extf %5 : vector<1x128xbf16> to vector<1x128xf32>
    %c288 = arith.constant 288 : index
    %c0_6 = arith.constant 0 : index
    %7 = vector.load %arg2[%c288, %c0_6] : memref<320x128xbf16, #tpu.memory_space<vmem>>, vector<1x128xbf16>
    %8 = arith.extf %7 : vector<1x128xbf16> to vector<1x128xf32>
    %c304 = arith.constant 304 : index
    %c0_7 = arith.constant 0 : index
    %9 = vector.load %arg2[%c304, %c0_7] : memref<320x128xbf16, #tpu.memory_space<vmem>>, vector<1x128xbf16>
    %10 = arith.extf %9 : vector<1x128xbf16> to vector<1x128xf32>
    %cst = arith.constant dense<0.000000e+00> : vector<8x128xf32>
    %11 = tpu.matmul %1, %2, %cst {dimension_numbers = #tpu.dot_dimension_numbers<[1], [0], [0], [1], [0, 0, 1, 1], [], []>} : vector<8x8xbf16>, vector<8x128xbf16>, vector<8x128xf32> -> vector<8x128xf32>
    %12 = vector.broadcast %6 : vector<1x128xf32> to vector<8x128xf32>
    %13 = arith.addf %11, %12 : vector<8x128xf32>
    %cst_8 = arith.constant 0.000000e+00 : f32
    %14 = vector.broadcast %cst_8 : f32 to vector<8x128xf32>
    %15 = arith.maximumf %13, %14 : vector<8x128xf32>
    %16 = arith.truncf %15 : vector<8x128xf32> to vector<8x128xbf16>
    %cst_9 = arith.constant dense<0.000000e+00> : vector<8x128xf32>
    %17 = tpu.matmul %16, %3, %cst_9 {dimension_numbers = #tpu.dot_dimension_numbers<[1], [0], [0], [1], [0, 0, 1, 1], [], []>} : vector<8x128xbf16>, vector<128x128xbf16>, vector<8x128xf32> -> vector<8x128xf32>
    %18 = vector.broadcast %8 : vector<1x128xf32> to vector<8x128xf32>
    %19 = arith.addf %17, %18 : vector<8x128xf32>
    %cst_10 = arith.constant 0.000000e+00 : f32
    %20 = vector.broadcast %cst_10 : f32 to vector<8x128xf32>
    %21 = arith.maximumf %19, %20 : vector<8x128xf32>
    %22 = arith.truncf %21 : vector<8x128xf32> to vector<8x128xbf16>
    %cst_11 = arith.constant dense<0.000000e+00> : vector<8x128xf32>
    %23 = tpu.matmul %22, %4, %cst_11 {dimension_numbers = #tpu.dot_dimension_numbers<[1], [0], [0], [1], [0, 0, 1, 1], [], []>} : vector<8x128xbf16>, vector<128x128xbf16>, vector<8x128xf32> -> vector<8x128xf32>
    %24 = vector.broadcast %10 : vector<1x128xf32> to vector<8x128xf32>
    %25 = arith.addf %23, %24 : vector<8x128xf32>
    %26 = vector.extract_strided_slice %25 {offsets = [0, 0], sizes = [8, 8], strides = [1, 1]} : vector<8x128xf32> to vector<8x8xf32>
    %c0_12 = arith.constant 0 : index
    %c0_13 = arith.constant 0 : index
    %27 = vector.load %arg3[%c0_12, %c0_13] : memref<8x8xf32, #tpu.memory_space<vmem>>, vector<8x8xf32>
    tpu.vector_store %arg3[%c0_12, %c0_13], %26 {strides = array<i32>} : memref<8x8xf32, #tpu.memory_space<vmem>>, vector<8x8xf32>,
    return
  }
  func.func @transform_0(%arg0: i32) -> (i32, i32) {
    %c0_i32 = arith.constant 0 : i32
    %c0_i32_0 = arith.constant 0 : i32
    return %arg0, %c0_i32 : i32, i32
  }
  func.func @transform_1(%arg0: i32) -> (i32, i32) {
    %c0_i32 = arith.constant 0 : i32
    %c0_i32_0 = arith.constant 0 : i32
    %c0_i32_1 = arith.constant 0 : i32
    return %c0_i32, %c0_i32_0 : i32, i32
  }
  func.func @transform_2(%arg0: i32) -> (i32, i32) {
    %c0_i32 = arith.constant 0 : i32
    %c0_i32_0 = arith.constant 0 : i32
    return %arg0, %c0_i32 : i32, i32
  }
}

</mosaic_0001>

<llo_original>
// kernel: ann_model_forward.1
$region0: #{ann_model_forward.1}
  #allocation0 [shape = 'u32[]', space=smem, size = 0x4, offset = 0x4, fixed_abs, tag = 'smem constant byte address 0x4 - core index']
  #allocation1 [shape = 'u32[144,128]{1,0:T(1,128)}', space=vmem, size = 0x12000, scoped, tag = 'internal scratch']
  %s0 = inlined_call_operand.hbm [shape: f32[8,8], index: 0, kind: input, shape index: {}]
  %s1 = inlined_call_operand.hbm [shape: bf16[320,128], index: 1, kind: input, shape index: {}]
  %s2 = inlined_call_operand.vmem [shape: f32[8,8], index: 2, kind: output, shape index: {}]
  %s3 = sld [smem:[#allocation0]]
  $region26: #{ann_model_forward.1} parent=0
    _
  %s5 = ssub.s32 1, %s3
  %s6 = scalar_select 0, %s5, %s3
  $region1: #{ann_model_forward.1} parent=0
    #allocation2 [shape = 'u8[4096]{0}', space=vmem, size = 0x1000, scoped, tag = 'input window, operand 0, single buffered']
    #allocation3 [shape = 's32[1]{0}', space=sflag, size = 0x4, scoped, tag = 'scoped memory for ann_model_forward.1']
    #allocation4 [shape = 'u8[81920]{0}', space=vmem, size = 0x14000, scoped, tag = 'input window, operand 1, single buffered']
    #allocation5 [shape = 's32[1]{0}', space=sflag, size = 0x4, scoped, tag = 'scoped memory for ann_model_forward.1']
    %7 = vsyncpa [#allocation3], 0
    %8 = vsyncpa [#allocation5], 0
    // Predicated region
    $region2: #{ann_model_forward.1} parent=1 // pred_check
      _
    $region3: #{ann_model_forward.1} parent=1 // pred_check_branch
      %10 = sbr.rel (0) target = $region5
    $region4: #{ann_model_forward.1} parent=1 // pred_region
      %s12 = ssub.s32 128, 128
      %13 = vsyncadd [#allocation3], %s12
      %s15 = sshll.u32 [#allocation2], 4
      %s16 = int_to_ptr.vmem [resolvable:$true] %s15
      %18 = dma.hbm_to_vmem [thread:$0]  %s0, 128, %s16, [#allocation3]
    $region5: #{ann_model_forward.1} parent=1 // pred_fallthru
      _
    // Predicated region
    $region6: #{ann_model_forward.1} parent=1 // pred_check
      _
    $region7: #{ann_model_forward.1} parent=1 // pred_check_branch
      %20 = sbr.rel (0) target = $region9
    $region8: #{ann_model_forward.1} parent=1 // pred_region
      %s22 = ssub.s32 2560, 2560
      %23 = vsyncadd [#allocation5], %s22
      %s24 = sshll.u32 [#allocation4], 4
      %s25 = int_to_ptr.vmem [resolvable:$true] %s24
      %30 = dma.hbm_to_vmem [thread:$0]  %s1, 2560, %s25, [#allocation5], 64, 64, 4
    $region9: #{ann_model_forward.1} parent=1 // pred_fallthru
      _
    // Predicated region
    $region10: #{ann_model_forward.1} parent=1 // pred_check
      _
    $region11: #{ann_model_forward.1} parent=1 // pred_check_branch
      %32 = sbr.rel (0) target = $region13
    $region12: #{ann_model_forward.1} parent=1 // pred_region
      %33 = dma.done [#allocation3], 128
    $region13: #{ann_model_forward.1} parent=1 // pred_fallthru
      _
    // Predicated region
    $region14: #{ann_model_forward.1} parent=1 // pred_check
      _
    $region15: #{ann_model_forward.1} parent=1 // pred_check_branch
      %35 = sbr.rel (0) target = $region17
    $region16: #{ann_model_forward.1} parent=1 // pred_region
      %36 = dma.done [#allocation5], 2560
    $region17: #{ann_model_forward.1} parent=1 // pred_fallthru
      _
    %v38 = vld [vmem:[#allocation2] sm:$0xff]
    %v39 = vpack.c.bf16 %v38, %v38
    %v40 = vld [vmem:[#allocation4] sm:$0xf]
    %v41 = vld [vmem:[#allocation4 + $0x8] sm:$0xf]
    %v42 = vld [vmem:[#allocation4 + $0xc] sm:$0xf]
    %v43 = vld [vmem:[#allocation4 + $0x10] sm:$0xf]
    %v44 = vld [vmem:[#allocation4 + $0x14] sm:$0xf]
    %v45 = vld [vmem:[#allocation4 + $0x18] sm:$0xf]
    %v46 = vld [vmem:[#allocation4 + $0x1c] sm:$0xf]
    %v47 = vld [vmem:[#allocation4 + $0x20] sm:$0xf]
    %v48 = vld [vmem:[#allocation4 + $0x24] sm:$0xf]
    %v49 = vld [vmem:[#allocation4 + $0x28] sm:$0xf]
    %v50 = vld [vmem:[#allocation4 + $0x2c] sm:$0xf]
    %v51 = vld [vmem:[#allocation4 + $0x30] sm:$0xf]
    %v52 = vld [vmem:[#allocation4 + $0x34] sm:$0xf]
    %v53 = vld [vmem:[#allocation4 + $0x38] sm:$0xf]
    %v54 = vld [vmem:[#allocation4 + $0x3c] sm:$0xf]
    %v55 = vld [vmem:[#allocation4 + $0x40] sm:$0xf]
    %v56 = vld [vmem:[#allocation4 + $0x44] sm:$0xf]
    %v57 = vld [vmem:[#allocation4 + $0x48] sm:$0xf]
    %v58 = vld [vmem:[#allocation4 + $0x4c] sm:$0xf]
    %v59 = vld [vmem:[#allocation4 + $0x50] sm:$0xf]
    %v60 = vld [vmem:[#allocation4 + $0x54] sm:$0xf]
    %v61 = vld [vmem:[#allocation4 + $0x58] sm:$0xf]
    %v62 = vld [vmem:[#allocation4 + $0x5c] sm:$0xf]
    %v63 = vld [vmem:[#allocation4 + $0x60] sm:$0xf]
    %v64 = vld [vmem:[#allocation4 + $0x64] sm:$0xf]
    %v65 = vld [vmem:[#allocation4 + $0x68] sm:$0xf]
    %v66 = vld [vmem:[#allocation4 + $0x6c] sm:$0xf]
    %v67 = vld [vmem:[#allocation4 + $0x70] sm:$0xf]
    %v68 = vld [vmem:[#allocation4 + $0x74] sm:$0xf]
    %v69 = vld [vmem:[#allocation4 + $0x78] sm:$0xf]
    %v70 = vld [vmem:[#allocation4 + $0x7c] sm:$0xf]
    %v71 = vld [vmem:[#allocation4 + $0x80] sm:$0xf]
    %v72 = vld [vmem:[#allocation4 + $0x84] sm:$0xf]
    %v73 = vld [vmem:[#allocation4 + $0x88] sm:$0x1]
    %v74 = vunpack.c.l.bf16 %v73
    %v75 = vld [vmem:[#allocation4 + $0x90] sm:$0x1]
    %v76 = vunpack.c.l.bf16 %v75
    %v77 = vld [vmem:[#allocation4 + $0x98] sm:$0x1]
    %v78 = vunpack.c.l.bf16 %v77
    %v79 = vlaneseq
    %v80 = vshrl.u32 %v79, 7
    %v81 = vsub.s32 0, %v80
    %v82 = vrot.slane %v74, %v81
    %vm83 = vcmask 64512
    %v85 = vsel %vm83, %v39, 0
    %vm87 = vcmask 1043456
    %v89 = vsel %vm87, %v40, 0
    %91 = vmatprep.subr.bf16.mxu0 0
    %92 = vmatpush1.bf16.msra.mxu0 %v89
    %93 = vmatprep.subr.bf16.mxu0 0
    %94 = vmatpush1.bf16.msra.mxu0 0
    %95 = vmatprep.subr.bf16.mxu0 0
    %96 = vmatpush1.bf16.msra.mxu0 0
    %97 = vmatprep.subr.bf16.mxu0 0
    %98 = vmatpush1.bf16.msra.mxu0 0
    %99 = vmatprep.subr.bf16.mxu0 0
    %100 = vmatpush1.bf16.msra.mxu0 0
    %101 = vmatprep.subr.bf16.mxu0 0
    %102 = vmatpush1.bf16.msra.mxu0 0
    %103 = vmatprep.subr.bf16.mxu0 0
    %104 = vmatpush1.bf16.msra.mxu0 0
    %105 = vmatprep.subr.bf16.mxu0 0
    %106 = vmatpush1.bf16.msra.mxu0 0
    %107 = vmatprep.subr.bf16.mxu0 0
    %108 = vmatpush1.bf16.msra.mxu0 0
    %109 = vmatprep.subr.bf16.mxu0 0
    %110 = vmatpush1.bf16.msra.mxu0 0
    %111 = vmatprep.subr.bf16.mxu0 0
    %112 = vmatpush1.bf16.msra.mxu0 0
    %113 = vmatprep.subr.bf16.mxu0 0
    %114 = vmatpush1.bf16.msra.mxu0 0
    %115 = vmatprep.subr.bf16.mxu0 0
    %116 = vmatpush1.bf16.msra.mxu0 0
    %117 = vmatprep.subr.bf16.mxu0 0
    %118 = vmatpush1.bf16.msra.mxu0 0
    %119 = vmatprep.subr.bf16.mxu0 0
    %120 = vmatpush1.bf16.msra.mxu0 0
    %121 = vmatprep.subr.bf16.mxu0 0
    %122 = vmatpush1.bf16.msra.mxu0 0
    %123 = vmatprep.mubr.bf16.mxu0 0
    %124 = vmatmul.mubr.bf16.gmra.mrb[0].mxu0 %v85
    %v125 = vpop.f32.mrb[0].mxu0
    %v126 = vadd.f32 %v82, %v125
    %v127 = vpop.f32.mrb[0].mxu0
    %v128 = vpop.f32.mrb[0].mxu0
    %v129 = vpop.f32.mrb[0].mxu0
    %130 = vdwg.mxu0
    %v131 = vmax.f32 %v126, 0.0
    %v132 = vpack.c.bf16 %v131, %v131
    %v133 = vlaneseq
    %v134 = vshrl.u32 %v133, 7
    %v135 = vsub.s32 0, %v134
    %v136 = vrot.slane %v76, %v135
    %v153 = vunpack.c.l.b16 %v41
    %v154 = vunpack.c.l.b16 %v42
    %v155 = vunpack.c.l.b16 %v43
    %v156 = vunpack.c.l.b16 %v44
    %v157 = vunpack.c.l.b16 %v45
    %v158 = vunpack.c.l.b16 %v46
    %v159 = vunpack.c.l.b16 %v47
    %v160 = vunpack.c.l.b16 %v48
    %v161 = vunpack.c.l.b16 %v49
    %v162 = vunpack.c.l.b16 %v50
    %v163 = vunpack.c.l.b16 %v51
    %v164 = vunpack.c.l.b16 %v52
    %v165 = vunpack.c.l.b16 %v53
    %v166 = vunpack.c.l.b16 %v54
    %v167 = vunpack.c.l.b16 %v55
    %v168 = vunpack.c.l.b16 %v56
    %v169 = vpack.c.b16 %v154, %v153
    %v170 = vpack.c.b16 %v156, %v155
    %v171 = vpack.c.b16 %v158, %v157
    %v172 = vpack.c.b16 %v160, %v159
    %v173 = vpack.c.b16 %v162, %v161
    %v174 = vpack.c.b16 %v164, %v163
    %v175 = vpack.c.b16 %v166, %v165
    %v176 = vpack.c.b16 %v168, %v167
    %185 = vmatprep.subr.bf16.mxu0 0
    %186 = vmatpush1.bf16.msra.mxu0 %v169
    %187 = vmatprep.subr.bf16.mxu0 0
    %188 = vmatpush1.bf16.msra.mxu0 %v170
    %189 = vmatprep.subr.bf16.mxu0 0
    %190 = vmatpush1.bf16.msra.mxu0 %v171
    %191 = vmatprep.subr.bf16.mxu0 0
    %192 = vmatpush1.bf16.msra.mxu0 %v172
    %193 = vmatprep.subr.bf16.mxu0 0
    %194 = vmatpush1.bf16.msra.mxu0 %v173
    %195 = vmatprep.subr.bf16.mxu0 0
    %196 = vmatpush1.bf16.msra.mxu0 %v174
    %197 = vmatprep.subr.bf16.mxu0 0
    %198 = vmatpush1.bf16.msra.mxu0 %v175
    %199 = vmatprep.subr.bf16.mxu0 0
    %200 = vmatpush1.bf16.msra.mxu0 %v176
    %201 = vmatprep.subr.bf16.mxu0 0
    %202 = vmatpush1.bf16.msra.mxu0 0
    %203 = vmatprep.subr.bf16.mxu0 0
    %204 = vmatpush1.bf16.msra.mxu0 0
    %205 = vmatprep.subr.bf16.mxu0 0
    %206 = vmatpush1.bf16.msra.mxu0 0
    %207 = vmatprep.subr.bf16.mxu0 0
    %208 = vmatpush1.bf16.msra.mxu0 0
    %209 = vmatprep.subr.bf16.mxu0 0
    %210 = vmatpush1.bf16.msra.mxu0 0
    %211 = vmatprep.subr.bf16.mxu0 0
    %212 = vmatpush1.bf16.msra.mxu0 0
    %213 = vmatprep.subr.bf16.mxu0 0
    %214 = vmatpush1.bf16.msra.mxu0 0
    %215 = vmatprep.subr.bf16.mxu0 0
    %216 = vmatpush1.bf16.msra.mxu0 0
    %217 = vmatprep.mubr.bf16.mxu0 0
    %218 = vmatmul.mubr.bf16.gmra.mrb[0].mxu0 %v132
    %v219 = vpop.f32.mrb[0].mxu0
    %v220 = vadd.f32 %v136, %v219
    %v221 = vpop.f32.mrb[0].mxu0
    %v222 = vpop.f32.mrb[0].mxu0
    %v223 = vpop.f32.mrb[0].mxu0
    %224 = vdwg.mxu0
    %v225 = vmax.f32 %v220, 0.0
    %v226 = vpack.c.bf16 %v225, %v225
    %v227 = vlaneseq
    %v228 = vshrl.u32 %v227, 7
    %v229 = vsub.s32 0, %v228
    %v230 = vrot.slane %v78, %v229
    %v247 = vunpack.c.l.b16 %v57
    %v248 = vunpack.c.l.b16 %v58
    %v249 = vunpack.c.l.b16 %v59
    %v250 = vunpack.c.l.b16 %v60
    %v251 = vunpack.c.l.b16 %v61
    %v252 = vunpack.c.l.b16 %v62
    %v253 = vunpack.c.l.b16 %v63
    %v254 = vunpack.c.l.b16 %v64
    %v255 = vunpack.c.l.b16 %v65
    %v256 = vunpack.c.l.b16 %v66
    %v257 = vunpack.c.l.b16 %v67
    %v258 = vunpack.c.l.b16 %v68
    %v259 = vunpack.c.l.b16 %v69
    %v260 = vunpack.c.l.b16 %v70
    %v261 = vunpack.c.l.b16 %v71
    %v262 = vunpack.c.l.b16 %v72
    %v263 = vpack.c.b16 %v248, %v247
    %v264 = vpack.c.b16 %v250, %v249
    %v265 = vpack.c.b16 %v252, %v251
    %v266 = vpack.c.b16 %v254, %v253
    %v267 = vpack.c.b16 %v256, %v255
    %v268 = vpack.c.b16 %v258, %v257
    %v269 = vpack.c.b16 %v260, %v259
    %v270 = vpack.c.b16 %v262, %v261
    %279 = vmatprep.subr.bf16.mxu0 0
    %280 = vmatpush1.bf16.msra.mxu0 %v263
    %281 = vmatprep.subr.bf16.mxu0 0
    %282 = vmatpush1.bf16.msra.mxu0 %v264
    %283 = vmatprep.subr.bf16.mxu0 0
    %284 = vmatpush1.bf16.msra.mxu0 %v265
    %285 = vmatprep.subr.bf16.mxu0 0
    %286 = vmatpush1.bf16.msra.mxu0 %v266
    %287 = vmatprep.subr.bf16.mxu0 0
    %288 = vmatpush1.bf16.msra.mxu0 %v267
    %289 = vmatprep.subr.bf16.mxu0 0
    %290 = vmatpush1.bf16.msra.mxu0 %v268
    %291 = vmatprep.subr.bf16.mxu0 0
    %292 = vmatpush1.bf16.msra.mxu0 %v269
    %293 = vmatprep.subr.bf16.mxu0 0
    %294 = vmatpush1.bf16.msra.mxu0 %v270
    %295 = vmatprep.subr.bf16.mxu0 0
    %296 = vmatpush1.bf16.msra.mxu0 0
    %297 = vmatprep.subr.bf16.mxu0 0
    %298 = vmatpush1.bf16.msra.mxu0 0
    %299 = vmatprep.subr.bf16.mxu0 0
    %300 = vmatpush1.bf16.msra.mxu0 0
    %301 = vmatprep.subr.bf16.mxu0 0
    %302 = vmatpush1.bf16.msra.mxu0 0
    %303 = vmatprep.subr.bf16.mxu0 0
    %304 = vmatpush1.bf16.msra.mxu0 0
    %305 = vmatprep.subr.bf16.mxu0 0
    %306 = vmatpush1.bf16.msra.mxu0 0
    %307 = vmatprep.subr.bf16.mxu0 0
    %308 = vmatpush1.bf16.msra.mxu0 0
    %309 = vmatprep.subr.bf16.mxu0 0
    %310 = vmatpush1.bf16.msra.mxu0 0
    %311 = vmatprep.mubr.bf16.mxu0 0
    %312 = vmatmul.mubr.bf16.gmra.mrb[0].mxu0 %v226
    %v313 = vpop.f32.mrb[0].mxu0
    %v314 = vadd.f32 %v230, %v313
    %v315 = vpop.f32.mrb[0].mxu0
    %v316 = vpop.f32.mrb[0].mxu0
    %v317 = vpop.f32.mrb[0].mxu0
    %318 = vdwg.mxu0
    %319 = vst.msk [vmem:[%s2] sm:$0xff] %vm83, %v314
    // Predicated region
    $region18: #{ann_model_forward.1} parent=1 // pred_check
      _
    $region19: #{ann_model_forward.1} parent=1 // pred_check_branch
      %321 = sbr.rel (0) target = $region21
    $region20: #{ann_model_forward.1} parent=1 // pred_region
      _
    $region21: #{ann_model_forward.1} parent=1 // pred_fallthru
      _
    // Predicated region
    $region22: #{ann_model_forward.1} parent=1 // pred_check
      _
    $region23: #{ann_model_forward.1} parent=1 // pred_check_branch
      %323 = sbr.rel (0) target = $region25
    $region24: #{ann_model_forward.1} parent=1 // pred_region
      _
    $region25: #{ann_model_forward.1} parent=1 // pred_fallthru
      _
    %324 = vsyncpa [#allocation3], 1
    %325 = vsyncpa [#allocation5], 1

</llo_original>
